<compile_context>
chip_gen: v7x
topology: tpu7x:2x2x1
jax: 0.10.0
libtpu: 0.0.40
codegen_flags: <defaults>
</compile_context>

<pallas_src>
import functools

import jax
import jax.numpy as jnp
from jax.experimental import pallas as pl
from jax.experimental.pallas import tpu as pltpu

ALIGN_CORNERS = False
TILE_UV = 256  # multiple of 128 -> lane-dense weights/output, unmasked 128-lane stores


def _sampler2d_kernel(tex_ref, hf_ref, wf_ref, uv_ref, out_ref, *, W, H, align_corners):
    # tex_ref: (C, W*H) f32 resident     hf_ref/wf_ref: (W*H, 1) f32 resident
    # uv_ref : (2, T) f32                out_ref: (C, T) f32
    u = uv_ref[0:1, :]  # (1, T) x coordinate -> H axis (last dim of (C, W, H))
    v = uv_ref[1:2, :]  # (1, T) y coordinate -> W axis

    # grid_sample unnormalization of g = 2*uv - 1.
    if align_corners:
        x = u * (H - 1)
        y = v * (W - 1)
    else:
        x = u * H - 0.5
        y = v * W - 0.5

    # Tent weights over the flattened (w, h) tap axis: exactly the 4-tap bilinear
    # weights, with out-of-range taps (and the -10 uv pad sentinel) getting weight 0,
    # i.e. padding_mode='zeros'. hf/wf are resident index planes, so the whole weight
    # build is ~9 (WH, T) VPU passes (no iota, no int divide, no float-equality one-hots).
    a = jnp.maximum(1.0 - jnp.abs(hf_ref[...] - x), 0.0)  # (WH, T)
    b = jnp.maximum(1.0 - jnp.abs(wf_ref[...] - y), 0.0)  # (WH, T)
    wc = a * b                                            # (WH, T)

    # Single MXU contraction over W*H, lane-dense (C, T) output (unmasked stores).
    out_ref[...] = jnp.dot(tex_ref[...], wc, preferred_element_type=jnp.float32)


def _round_up(x, m):
    return (x + m - 1) // m * m


def sampler2d(texture, param, align_corners=ALIGN_CORNERS, tile_uv=TILE_UV):
    """texture: (C, W, H), param: (UV, 2) with uv in [0,1]  ->  (UV, C) float32."""
    C, W, H = texture.shape
    UV = param.shape[0]
    WH = W * H

    # Keep the tile a multiple of 128 (lane-dense), but don't over-pad tiny UV.
    tile_uv = max(128, min(tile_uv, _round_up(UV, 128)))
    num_tiles = pl.cdiv(UV, tile_uv)
    UVp = num_tiles * tile_uv

    # Flatten the texture to (C, W*H); flat tap index = w*H + h.
    texT = texture.astype(jnp.float32).reshape(C, WH)

    # Per-tap index planes (h and w coordinate of every flat tap), built once outside.
    h_plane = jnp.tile(jnp.arange(H, dtype=jnp.float32), W).reshape(WH, 1)
    w_plane = jnp.repeat(jnp.arange(W, dtype=jnp.float32), H).reshape(WH, 1)

    # Lane-dense uv layout; pad UV with an out-of-range sentinel whose tent weights are
    # identically zero (same mechanism as padding_mode='zeros') so tail tiles are safe.
    uvT = jnp.transpose(param.astype(jnp.float32))  # (2, UV)
    if UVp != UV:
        uvT = jnp.pad(uvT, ((0, 0), (0, UVp - UV)), constant_values=-10.0)

    # Explicit VMEM budget: resident operands single-buffered, streamed blocks
    # double-buffered, generous headroom for the (WH, tile) weight staging.
    fB = 4
    est = (
        _round_up(C, 8) * _round_up(WH, 128) * fB        # texture (Buffered(1))
        + 2 * _round_up(WH, 8) * 128 * fB                 # h/w index planes (Buffered(1))
        + 2 * 2 * 8 * tile_uv * fB                        # uv blocks (double-buffered)
        + 2 * _round_up(C, 8) * tile_uv * fB              # out blocks (double-buffered)
        + 4 * _round_up(WH, 8) * tile_uv * fB             # a/b/wc staging headroom
    )
    vmem_limit = int(min(max(2 * est, 32 * 2**20), 48 * 2**20))

    kernel = functools.partial(
        _sampler2d_kernel, W=W, H=H, align_corners=align_corners
    )

    outT = pl.pallas_call(
        kernel,
        out_shape=jax.ShapeDtypeStruct((C, UVp), jnp.float32),
        grid_spec=pltpu.PrefetchScalarGridSpec(
            num_scalar_prefetch=0,
            grid=(num_tiles,),
            in_specs=[
                # Texture + index planes stay VMEM-resident across all UV tiles
                # (constant index_map) and are single-buffered.
                pl.BlockSpec((C, WH), lambda i: (0, 0), pipeline_mode=pl.Buffered(1)),
                pl.BlockSpec((WH, 1), lambda i: (0, 0), pipeline_mode=pl.Buffered(1)),
                pl.BlockSpec((WH, 1), lambda i: (0, 0), pipeline_mode=pl.Buffered(1)),
                # uv tile, lane-dense over UV.
                pl.BlockSpec((2, tile_uv), lambda i: (0, i)),
            ],
            out_specs=pl.BlockSpec((C, tile_uv), lambda i: (0, i)),
        ),
        compiler_params=pltpu.CompilerParams(
            dimension_semantics=("parallel",),  # UV tiles shard across TCs (v7x megacore)
            vmem_limit_bytes=vmem_limit,
        ),
    )(texT, h_plane, w_plane, uvT)

    # Module spec wants (UV, C). Callers that can consume the lane-dense (C, UV) slab
    # directly should take outT[:, :UV] and skip this extra HBM pass.
    return outT[:, :UV].T


def _sampler2d_ref(texture, param, align_corners=ALIGN_CORNERS):
    """Pure-JAX reference of grid_sample bilinear / zeros padding for validation."""
    C, W, H = texture.shape
    u, v = param[:, 0], param[:, 1]
    if align_corners:
        x = u * (H - 1)
        y = v * (W - 1)
    else:
        x = u * H - 0.5
        y = v * W - 0.5
    x0 = jnp.floor(x)
    x1 = x0 + 1
    y0 = jnp.floor(y)
    y1 = y0 + 1
    wx1 = x - x0
    wx0 = 1 - wx1
    wy1 = y - y0
    wy0 = 1 - wy1

    def tap(yi, xi):
        inb = (yi >= 0) & (yi < W) & (xi >= 0) & (xi < H)
        yc = jnp.clip(yi, 0, W - 1).astype(jnp.int32)
        xc = jnp.clip(xi, 0, H - 1).astype(jnp.int32)
        vals = texture[:, yc, xc]  # (C, UV)
        return jnp.where(inb[None, :], vals, 0.0)

    out = (
        (wy0 * wx0) * tap(y0, x0)
        + (wy0 * wx1) * tap(y0, x1)
        + (wy1 * wx0) * tap(y1, x0)
        + (wy1 * wx1) * tap(y1, x1)
    )
    return out.T  # (UV, C)


if __name__ == "__main__":
    C, W, H, UV = 4, 16, 16, 8
    key = jax.random.PRNGKey(0)
    k_tex, k_uv = jax.random.split(key)
    texture = jax.random.normal(k_tex, (C, W, H), dtype=jnp.float32)
    param = jax.random.uniform(k_uv, (UV, 2), dtype=jnp.float32)  # uv in [0, 1]

    out = jax.block_until_ready(sampler2d(texture, param))
    ref = jax.block_until_ready(_sampler2d_ref(texture, param))

    assert out.shape == (UV, C), out.shape
    assert jnp.allclose(out, ref, atol=1e-5, rtol=1e-5), jnp.max(jnp.abs(out - ref))
    print("KERNEL_OK")
</pallas_src>

<mosaic_0001>
module attributes {stable_mosaic.version = 11 : i64} {
  func.func @_sampler2d_kernel(%arg0: i32, %arg1: memref<4x256xf32, #tpu.memory_space<vmem>>, %arg2: memref<256x1xf32, #tpu.memory_space<vmem>>, %arg3: memref<256x1xf32, #tpu.memory_space<vmem>>, %arg4: memref<2x128xf32, #tpu.memory_space<vmem>>, %arg5: memref<4x128xf32, #tpu.memory_space<vmem>>) attributes {dimension_semantics = [#tpu.dimension_semantics<parallel>], iteration_bounds = array<i64: 1>, scalar_prefetch = 0 : i64, scratch_operands = 0 : i64, tpu.core_type = #tpu.core_type<tc>, window_params = [{pipeline_mode = #tpu.pipeline_mode<synchronous>, transform_indices = @transform_0, window_bounds = array<i64: 4, 256>}, {pipeline_mode = #tpu.pipeline_mode<synchronous>, transform_indices = @transform_1, window_bounds = array<i64: 256, 1>}, {pipeline_mode = #tpu.pipeline_mode<synchronous>, transform_indices = @transform_2, window_bounds = array<i64: 256, 1>}, {transform_indices = @transform_3, window_bounds = array<i64: 2, 128>}, {transform_indices = @transform_4, window_bounds = array<i64: 4, 128>}]} {
    %c0 = arith.constant 0 : index
    %c0_0 = arith.constant 0 : index
    %0 = vector.load %arg4[%c0, %c0_0] : memref<2x128xf32, #tpu.memory_space<vmem>>, vector<1x128xf32>
    %c1 = arith.constant 1 : index
    %c0_1 = arith.constant 0 : index
    %1 = vector.load %arg4[%c1, %c0_1] : memref<2x128xf32, #tpu.memory_space<vmem>>, vector<1x128xf32>
    %cst = arith.constant 1.600000e+01 : f32
    %2 = vector.broadcast %cst : f32 to vector<1x128xf32>
    %3 = arith.mulf %0, %2 : vector<1x128xf32>
    %cst_2 = arith.constant 5.000000e-01 : f32
    %4 = vector.broadcast %cst_2 : f32 to vector<1x128xf32>
    %5 = arith.subf %3, %4 : vector<1x128xf32>
    %cst_3 = arith.constant 1.600000e+01 : f32
    %6 = vector.broadcast %cst_3 : f32 to vector<1x128xf32>
    %7 = arith.mulf %1, %6 : vector<1x128xf32>
    %cst_4 = arith.constant 5.000000e-01 : f32
    %8 = vector.broadcast %cst_4 : f32 to vector<1x128xf32>
    %9 = arith.subf %7, %8 : vector<1x128xf32>
    %c0_5 = arith.constant 0 : index
    %c0_6 = arith.constant 0 : index
    %10 = vector.load %arg2[%c0_5, %c0_6] : memref<256x1xf32, #tpu.memory_space<vmem>>, vector<256x1xf32>
    %11 = vector.broadcast %10 : vector<256x1xf32> to vector<256x128xf32>
    %12 = vector.broadcast %5 : vector<1x128xf32> to vector<256x128xf32>
    %13 = arith.subf %11, %12 : vector<256x128xf32>
    %14 = math.absf %13 : vector<256x128xf32>
    %cst_7 = arith.constant 1.000000e+00 : f32
    %15 = vector.broadcast %cst_7 : f32 to vector<256x128xf32>
    %16 = arith.subf %15, %14 : vector<256x128xf32>
    %cst_8 = arith.constant 0.000000e+00 : f32
    %17 = vector.broadcast %cst_8 : f32 to vector<256x128xf32>
    %18 = arith.maximumf %16, %17 : vector<256x128xf32>
    %c0_9 = arith.constant 0 : index
    %c0_10 = arith.constant 0 : index
    %19 = vector.load %arg3[%c0_9, %c0_10] : memref<256x1xf32, #tpu.memory_space<vmem>>, vector<256x1xf32>
    %20 = vector.broadcast %19 : vector<256x1xf32> to vector<256x128xf32>
    %21 = vector.broadcast %9 : vector<1x128xf32> to vector<256x128xf32>
    %22 = arith.subf %20, %21 : vector<256x128xf32>
    %23 = math.absf %22 : vector<256x128xf32>
    %cst_11 = arith.constant 1.000000e+00 : f32
    %24 = vector.broadcast %cst_11 : f32 to vector<256x128xf32>
    %25 = arith.subf %24, %23 : vector<256x128xf32>
    %cst_12 = arith.constant 0.000000e+00 : f32
    %26 = vector.broadcast %cst_12 : f32 to vector<256x128xf32>
    %27 = arith.maximumf %25, %26 : vector<256x128xf32>
    %28 = arith.mulf %18, %27 : vector<256x128xf32>
    %c0_13 = arith.constant 0 : index
    %c0_14 = arith.constant 0 : index
    %29 = vector.load %arg1[%c0_13, %c0_14] : memref<4x256xf32, #tpu.memory_space<vmem>>, vector<4x256xf32>
    %cst_15 = arith.constant dense<0.000000e+00> : vector<4x128xf32>
    %30 = tpu.matmul %29, %28, %cst_15 {dimension_numbers = #tpu.dot_dimension_numbers<[1], [0], [0], [1], [0, 0, 1, 1], [], []>} : vector<4x256xf32>, vector<256x128xf32>, vector<4x128xf32> -> vector<4x128xf32>
    %c0_16 = arith.constant 0 : index
    %c0_17 = arith.constant 0 : index
    %31 = vector.load %arg5[%c0_16, %c0_17] : memref<4x128xf32, #tpu.memory_space<vmem>>, vector<4x128xf32>
    tpu.vector_store %arg5[%c0_16, %c0_17], %30 {strides = array<i32>} : memref<4x128xf32, #tpu.memory_space<vmem>>, vector<4x128xf32>,
    return
  }
  func.func @transform_0(%arg0: i32) -> (i32, i32) {
    %c0_i32 = arith.constant 0 : i32
    %c0_i32_0 = arith.constant 0 : i32
    %c0_i32_1 = arith.constant 0 : i32
    return %c0_i32, %c0_i32_0 : i32, i32
  }
  func.func @transform_1(%arg0: i32) -> (i32, i32) {
    %c0_i32 = arith.constant 0 : i32
    %c0_i32_0 = arith.constant 0 : i32
    %c0_i32_1 = arith.constant 0 : i32
    return %c0_i32, %c0_i32_0 : i32, i32
  }
  func.func @transform_2(%arg0: i32) -> (i32, i32) {
    %c0_i32 = arith.constant 0 : i32
    %c0_i32_0 = arith.constant 0 : i32
    %c0_i32_1 = arith.constant 0 : i32
    return %c0_i32, %c0_i32_0 : i32, i32
  }
  func.func @transform_3(%arg0: i32) -> (i32, i32) {
    %c0_i32 = arith.constant 0 : i32
    %c0_i32_0 = arith.constant 0 : i32
    return %c0_i32, %arg0 : i32, i32
  }
  func.func @transform_4(%arg0: i32) -> (i32, i32) {
    %c0_i32 = arith.constant 0 : i32
    %c0_i32_0 = arith.constant 0 : i32
    return %c0_i32, %arg0 : i32, i32
  }
}

</mosaic_0001>

<llo_original>
// kernel: tpu_custom_call.1
$region0: #{tpu_custom_call.1}
  #allocation0 [shape = 'u32[]', space=smem, size = 0x4, offset = 0x4, fixed_abs, tag = 'smem constant byte address 0x4 - core index']
  #allocation1 [shape = 'u32[144,128]{1,0:T(1,128)}', space=vmem, size = 0x12000, scoped, tag = 'internal scratch']
  %s0 = inlined_call_operand.vmem [shape: f32[4,256], index: 0, kind: input, shape index: {}]
  %s1 = inlined_call_operand.vmem [shape: f32[256,1], index: 1, kind: input, shape index: {}]
  %s2 = inlined_call_operand.vmem [shape: f32[256,1], index: 2, kind: input, shape index: {}]
  %s3 = inlined_call_operand.vmem [shape: f32[2,128], index: 3, kind: input, shape index: {}]
  %s4 = inlined_call_operand.hbm [shape: f32[4,128], index: 4, kind: output, shape index: {}]
  %s5 = sld [smem:[#allocation0]]
  $region26: #{tpu_custom_call.1} parent=0
    _
  %s7 = ssub.s32 1, %s5
  %s8 = scalar_select 0, %s7, %s5
  $region1: #{tpu_custom_call.1} parent=0
    #allocation2 [shape = 'u8[2048]{0}', space=vmem, size = 0x800, scoped, tag = 'output window, operand 0, single buffered']
    #allocation3 [shape = 's32[1]{0}', space=sflag, size = 0x4, scoped, tag = 'scoped memory for tpu_custom_call.1']
    %9 = vsyncpa [#allocation3], 0
    // Predicated region
    $region2: #{tpu_custom_call.1} parent=1 // pred_check
      _
    $region3: #{tpu_custom_call.1} parent=1 // pred_check_branch
      %11 = sbr.rel (0) target = $region5
    $region4: #{tpu_custom_call.1} parent=1 // pred_region
      _
    $region5: #{tpu_custom_call.1} parent=1 // pred_fallthru
      _
    // Predicated region
    $region6: #{tpu_custom_call.1} parent=1 // pred_check
      _
    $region7: #{tpu_custom_call.1} parent=1 // pred_check_branch
      %13 = sbr.rel (0) target = $region9
    $region8: #{tpu_custom_call.1} parent=1 // pred_region
      _
    $region9: #{tpu_custom_call.1} parent=1 // pred_fallthru
      _
    // Predicated region
    $region10: #{tpu_custom_call.1} parent=1 // pred_check
      _
    $region11: #{tpu_custom_call.1} parent=1 // pred_check_branch
      %15 = sbr.rel (0) target = $region13
    $region12: #{tpu_custom_call.1} parent=1 // pred_region
      _
    $region13: #{tpu_custom_call.1} parent=1 // pred_fallthru
      _
    // Predicated region
    $region14: #{tpu_custom_call.1} parent=1 // pred_check
      _
    $region15: #{tpu_custom_call.1} parent=1 // pred_check_branch
      %17 = sbr.rel (0) target = $region17
    $region16: #{tpu_custom_call.1} parent=1 // pred_region
      _
    $region17: #{tpu_custom_call.1} parent=1 // pred_fallthru
      _
    %v18 = vld [vmem:[%s3] sm:$0x1]
    %v19 = vld [vmem:[%s3 + $0x1] sm:$0x1]
    %v20 = vmul.f32 %v18, 16.0
    %v21 = vsub.f32 %v20, 0.5
    %v22 = vmul.f32 %v19, 16.0
    %v23 = vsub.f32 %v22, 0.5
    %v24 = vld [vmem:[%s1] sm:$0xff]
    %v25 = vld [vmem:[%s1 + $0x8] sm:$0xff]
    %v26 = vld [vmem:[%s1 + $0x10] sm:$0xff]
    %v27 = vld [vmem:[%s1 + $0x18] sm:$0xff]
    %v28 = vld [vmem:[%s1 + $0x20] sm:$0xff]
    %v29 = vld [vmem:[%s1 + $0x28] sm:$0xff]
    %v30 = vld [vmem:[%s1 + $0x30] sm:$0xff]
    %v31 = vld [vmem:[%s1 + $0x38] sm:$0xff]
    %v32 = vld [vmem:[%s1 + $0x40] sm:$0xff]
    %v33 = vld [vmem:[%s1 + $0x48] sm:$0xff]
    %v34 = vld [vmem:[%s1 + $0x50] sm:$0xff]
    %v35 = vld [vmem:[%s1 + $0x58] sm:$0xff]
    %v36 = vld [vmem:[%s1 + $0x60] sm:$0xff]
    %v37 = vld [vmem:[%s1 + $0x68] sm:$0xff]
    %v38 = vld [vmem:[%s1 + $0x70] sm:$0xff]
    %v39 = vld [vmem:[%s1 + $0x78] sm:$0xff]
    %v40 = vld [vmem:[%s1 + $0x80] sm:$0xff]
    %v41 = vld [vmem:[%s1 + $0x88] sm:$0xff]
    %v42 = vld [vmem:[%s1 + $0x90] sm:$0xff]
    %v43 = vld [vmem:[%s1 + $0x98] sm:$0xff]
    %v44 = vld [vmem:[%s1 + $0xa0] sm:$0xff]
    %v45 = vld [vmem:[%s1 + $0xa8] sm:$0xff]
    %v46 = vld [vmem:[%s1 + $0xb0] sm:$0xff]
    %v47 = vld [vmem:[%s1 + $0xb8] sm:$0xff]
    %v48 = vld [vmem:[%s1 + $0xc0] sm:$0xff]
    %v49 = vld [vmem:[%s1 + $0xc8] sm:$0xff]
    %v50 = vld [vmem:[%s1 + $0xd0] sm:$0xff]
    %v51 = vld [vmem:[%s1 + $0xd8] sm:$0xff]
    %v52 = vld [vmem:[%s1 + $0xe0] sm:$0xff]
    %v53 = vld [vmem:[%s1 + $0xe8] sm:$0xff]
    %v54 = vld [vmem:[%s1 + $0xf0] sm:$0xff]
    %v55 = vld [vmem:[%s1 + $0xf8] sm:$0xff]
    %57 = vset.pattern.permute.xlu0 0
    %58 = vperm.xlu0 %57, %v24
    %v59 = vpop.permute.xlu0 %58
    %62 = vset.pattern.permute.xlu0 0
    %63 = vperm.xlu0 %62, %v25
    %v64 = vpop.permute.xlu0 %63
    %67 = vset.pattern.permute.xlu0 0
    %68 = vperm.xlu0 %67, %v26
    %v69 = vpop.permute.xlu0 %68
    %72 = vset.pattern.permute.xlu0 0
    %73 = vperm.xlu0 %72, %v27
    %v74 = vpop.permute.xlu0 %73
    %77 = vset.pattern.permute.xlu0 0
    %78 = vperm.xlu0 %77, %v28
    %v79 = vpop.permute.xlu0 %78
    %82 = vset.pattern.permute.xlu0 0
    %83 = vperm.xlu0 %82, %v29
    %v84 = vpop.permute.xlu0 %83
    %87 = vset.pattern.permute.xlu0 0
    %88 = vperm.xlu0 %87, %v30
    %v89 = vpop.permute.xlu0 %88
    %92 = vset.pattern.permute.xlu0 0
    %93 = vperm.xlu0 %92, %v31
    %v94 = vpop.permute.xlu0 %93
    %97 = vset.pattern.permute.xlu0 0
    %98 = vperm.xlu0 %97, %v32
    %v99 = vpop.permute.xlu0 %98
    %102 = vset.pattern.permute.xlu0 0
    %103 = vperm.xlu0 %102, %v33
    %v104 = vpop.permute.xlu0 %103
    %107 = vset.pattern.permute.xlu0 0
    %108 = vperm.xlu0 %107, %v34
    %v109 = vpop.permute.xlu0 %108
    %112 = vset.pattern.permute.xlu0 0
    %113 = vperm.xlu0 %112, %v35
    %v114 = vpop.permute.xlu0 %113
    %117 = vset.pattern.permute.xlu0 0
    %118 = vperm.xlu0 %117, %v36
    %v119 = vpop.permute.xlu0 %118
    %122 = vset.pattern.permute.xlu0 0
    %123 = vperm.xlu0 %122, %v37
    %v124 = vpop.permute.xlu0 %123
    %127 = vset.pattern.permute.xlu0 0
    %128 = vperm.xlu0 %127, %v38
    %v129 = vpop.permute.xlu0 %128
    %132 = vset.pattern.permute.xlu0 0
    %133 = vperm.xlu0 %132, %v39
    %v134 = vpop.permute.xlu0 %133
    %137 = vset.pattern.permute.xlu0 0
    %138 = vperm.xlu0 %137, %v40
    %v139 = vpop.permute.xlu0 %138
    %142 = vset.pattern.permute.xlu0 0
    %143 = vperm.xlu0 %142, %v41
    %v144 = vpop.permute.xlu0 %143
    %147 = vset.pattern.permute.xlu0 0
    %148 = vperm.xlu0 %147, %v42
    %v149 = vpop.permute.xlu0 %148
    %152 = vset.pattern.permute.xlu0 0
    %153 = vperm.xlu0 %152, %v43
    %v154 = vpop.permute.xlu0 %153
    %157 = vset.pattern.permute.xlu0 0
    %158 = vperm.xlu0 %157, %v44
    %v159 = vpop.permute.xlu0 %158
    %162 = vset.pattern.permute.xlu0 0
    %163 = vperm.xlu0 %162, %v45
    %v164 = vpop.permute.xlu0 %163
    %167 = vset.pattern.permute.xlu0 0
    %168 = vperm.xlu0 %167, %v46
    %v169 = vpop.permute.xlu0 %168
    %172 = vset.pattern.permute.xlu0 0
    %173 = vperm.xlu0 %172, %v47
    %v174 = vpop.permute.xlu0 %173
    %177 = vset.pattern.permute.xlu0 0
    %178 = vperm.xlu0 %177, %v48
    %v179 = vpop.permute.xlu0 %178
    %182 = vset.pattern.permute.xlu0 0
    %183 = vperm.xlu0 %182, %v49
    %v184 = vpop.permute.xlu0 %183
    %187 = vset.pattern.permute.xlu0 0
    %188 = vperm.xlu0 %187, %v50
    %v189 = vpop.permute.xlu0 %188
    %192 = vset.pattern.permute.xlu0 0
    %193 = vperm.xlu0 %192, %v51
    %v194 = vpop.permute.xlu0 %193
    %197 = vset.pattern.permute.xlu0 0
    %198 = vperm.xlu0 %197, %v52
    %v199 = vpop.permute.xlu0 %198
    %202 = vset.pattern.permute.xlu0 0
    %203 = vperm.xlu0 %202, %v53
    %v204 = vpop.permute.xlu0 %203
    %207 = vset.pattern.permute.xlu0 0
    %208 = vperm.xlu0 %207, %v54
    %v209 = vpop.permute.xlu0 %208
    %212 = vset.pattern.permute.xlu0 0
    %213 = vperm.xlu0 %212, %v55
    %v214 = vpop.permute.xlu0 %213
    %v216 = vlaneseq
    %v217 = vshrl.u32 %v216, 7
    %v218 = vsub.s32 0, %v217
    %v219 = vrot.slane %v21, %v218
    %v220 = vsub.f32 %v59, %v219
    %v221 = vsub.f32 %v64, %v219
    %v222 = vsub.f32 %v69, %v219
    %v223 = vsub.f32 %v74, %v219
    %v224 = vsub.f32 %v79, %v219
    %v225 = vsub.f32 %v84, %v219
    %v226 = vsub.f32 %v89, %v219
    %v227 = vsub.f32 %v94, %v219
    %v228 = vsub.f32 %v99, %v219
    %v229 = vsub.f32 %v104, %v219
    %v230 = vsub.f32 %v109, %v219
    %v231 = vsub.f32 %v114, %v219
    %v232 = vsub.f32 %v119, %v219
    %v233 = vsub.f32 %v124, %v219
    %v234 = vsub.f32 %v129, %v219
    %v235 = vsub.f32 %v134, %v219
    %v236 = vsub.f32 %v139, %v219
    %v237 = vsub.f32 %v144, %v219
    %v238 = vsub.f32 %v149, %v219
    %v239 = vsub.f32 %v154, %v219
    %v240 = vsub.f32 %v159, %v219
    %v241 = vsub.f32 %v164, %v219
    %v242 = vsub.f32 %v169, %v219
    %v243 = vsub.f32 %v174, %v219
    %v244 = vsub.f32 %v179, %v219
    %v245 = vsub.f32 %v184, %v219
    %v246 = vsub.f32 %v189, %v219
    %v247 = vsub.f32 %v194, %v219
    %v248 = vsub.f32 %v199, %v219
    %v249 = vsub.f32 %v204, %v219
    %v250 = vsub.f32 %v209, %v219
    %v251 = vsub.f32 %v214, %v219
    %v252 = vand.u32 2147483647, %v220
    %v253 = vand.u32 2147483647, %v221
    %v254 = vand.u32 2147483647, %v222
    %v255 = vand.u32 2147483647, %v223
    %v256 = vand.u32 2147483647, %v224
    %v257 = vand.u32 2147483647, %v225
    %v258 = vand.u32 2147483647, %v226
    %v259 = vand.u32 2147483647, %v227
    %v260 = vand.u32 2147483647, %v228
    %v261 = vand.u32 2147483647, %v229
    %v262 = vand.u32 2147483647, %v230
    %v263 = vand.u32 2147483647, %v231
    %v264 = vand.u32 2147483647, %v232
    %v265 = vand.u32 2147483647, %v233
    %v266 = vand.u32 2147483647, %v234
    %v267 = vand.u32 2147483647, %v235
    %v268 = vand.u32 2147483647, %v236
    %v269 = vand.u32 2147483647, %v237
    %v270 = vand.u32 2147483647, %v238
    %v271 = vand.u32 2147483647, %v239
    %v272 = vand.u32 2147483647, %v240
    %v273 = vand.u32 2147483647, %v241
    %v274 = vand.u32 2147483647, %v242
    %v275 = vand.u32 2147483647, %v243
    %v276 = vand.u32 2147483647, %v244
    %v277 = vand.u32 2147483647, %v245
    %v278 = vand.u32 2147483647, %v246
    %v279 = vand.u32 2147483647, %v247
    %v280 = vand.u32 2147483647, %v248
    %v281 = vand.u32 2147483647, %v249
    %v282 = vand.u32 2147483647, %v250
    %v283 = vand.u32 2147483647, %v251
    %v284 = vsub.f32 1.0, %v252
    %v285 = vsub.f32 1.0, %v253
    %v286 = vsub.f32 1.0, %v254
    %v287 = vsub.f32 1.0, %v255
    %v288 = vsub.f32 1.0, %v256
    %v289 = vsub.f32 1.0, %v257
    %v290 = vsub.f32 1.0, %v258
    %v291 = vsub.f32 1.0, %v259
    %v292 = vsub.f32 1.0, %v260
    %v293 = vsub.f32 1.0, %v261
    %v294 = vsub.f32 1.0, %v262
    %v295 = vsub.f32 1.0, %v263
    %v296 = vsub.f32 1.0, %v264
    %v297 = vsub.f32 1.0, %v265
    %v298 = vsub.f32 1.0, %v266
    %v299 = vsub.f32 1.0, %v267
    %v300 = vsub.f32 1.0, %v268
    %v301 = vsub.f32 1.0, %v269
    %v302 = vsub.f32 1.0, %v270
    %v303 = vsub.f32 1.0, %v271
    %v304 = vsub.f32 1.0, %v272
    %v305 = vsub.f32 1.0, %v273
    %v306 = vsub.f32 1.0, %v274
    %v307 = vsub.f32 1.0, %v275
    %v308 = vsub.f32 1.0, %v276
    %v309 = vsub.f32 1.0, %v277
    %v310 = vsub.f32 1.0, %v278
    %v311 = vsub.f32 1.0, %v279
    %v312 = vsub.f32 1.0, %v280
    %v313 = vsub.f32 1.0, %v281
    %v314 = vsub.f32 1.0, %v282
    %v315 = vsub.f32 1.0, %v283
    %v316 = vmax.f32 %v284, 0.0
    %v317 = vmax.f32 %v285, 0.0
    %v318 = vmax.f32 %v286, 0.0
    %v319 = vmax.f32 %v287, 0.0
    %v320 = vmax.f32 %v288, 0.0
    %v321 = vmax.f32 %v289, 0.0
    %v322 = vmax.f32 %v290, 0.0
    %v323 = vmax.f32 %v291, 0.0
    %v324 = vmax.f32 %v292, 0.0
    %v325 = vmax.f32 %v293, 0.0
    %v326 = vmax.f32 %v294, 0.0
    %v327 = vmax.f32 %v295, 0.0
    %v328 = vmax.f32 %v296, 0.0
    %v329 = vmax.f32 %v297, 0.0
    %v330 = vmax.f32 %v298, 0.0
    %v331 = vmax.f32 %v299, 0.0
    %v332 = vmax.f32 %v300, 0.0
    %v333 = vmax.f32 %v301, 0.0
    %v334 = vmax.f32 %v302, 0.0
    %v335 = vmax.f32 %v303, 0.0
    %v336 = vmax.f32 %v304, 0.0
    %v337 = vmax.f32 %v305, 0.0
    %v338 = vmax.f32 %v306, 0.0
    %v339 = vmax.f32 %v307, 0.0
    %v340 = vmax.f32 %v308, 0.0
    %v341 = vmax.f32 %v309, 0.0
    %v342 = vmax.f32 %v310, 0.0
    %v343 = vmax.f32 %v311, 0.0
    %v344 = vmax.f32 %v312, 0.0
    %v345 = vmax.f32 %v313, 0.0
    %v346 = vmax.f32 %v314, 0.0
    %v347 = vmax.f32 %v315, 0.0
    %v348 = vld [vmem:[%s2] sm:$0xff]
    %v349 = vld [vmem:[%s2 + $0x8] sm:$0xff]
    %v350 = vld [vmem:[%s2 + $0x10] sm:$0xff]
    %v351 = vld [vmem:[%s2 + $0x18] sm:$0xff]
    %v352 = vld [vmem:[%s2 + $0x20] sm:$0xff]
    %v353 = vld [vmem:[%s2 + $0x28] sm:$0xff]
    %v354 = vld [vmem:[%s2 + $0x30] sm:$0xff]
    %v355 = vld [vmem:[%s2 + $0x38] sm:$0xff]
    %v356 = vld [vmem:[%s2 + $0x40] sm:$0xff]
    %v357 = vld [vmem:[%s2 + $0x48] sm:$0xff]
    %v358 = vld [vmem:[%s2 + $0x50] sm:$0xff]
    %v359 = vld [vmem:[%s2 + $0x58] sm:$0xff]
    %v360 = vld [vmem:[%s2 + $0x60] sm:$0xff]
    %v361 = vld [vmem:[%s2 + $0x68] sm:$0xff]
    %v362 = vld [vmem:[%s2 + $0x70] sm:$0xff]
    %v363 = vld [vmem:[%s2 + $0x78] sm:$0xff]
    %v364 = vld [vmem:[%s2 + $0x80] sm:$0xff]
    %v365 = vld [vmem:[%s2 + $0x88] sm:$0xff]
    %v366 = vld [vmem:[%s2 + $0x90] sm:$0xff]
    %v367 = vld [vmem:[%s2 + $0x98] sm:$0xff]
    %v368 = vld [vmem:[%s2 + $0xa0] sm:$0xff]
    %v369 = vld [vmem:[%s2 + $0xa8] sm:$0xff]
    %v370 = vld [vmem:[%s2 + $0xb0] sm:$0xff]
    %v371 = vld [vmem:[%s2 + $0xb8] sm:$0xff]
    %v372 = vld [vmem:[%s2 + $0xc0] sm:$0xff]
    %v373 = vld [vmem:[%s2 + $0xc8] sm:$0xff]
    %v374 = vld [vmem:[%s2 + $0xd0] sm:$0xff]
    %v375 = vld [vmem:[%s2 + $0xd8] sm:$0xff]
    %v376 = vld [vmem:[%s2 + $0xe0] sm:$0xff]
    %v377 = vld [vmem:[%s2 + $0xe8] sm:$0xff]
    %v378 = vld [vmem:[%s2 + $0xf0] sm:$0xff]
    %v379 = vld [vmem:[%s2 + $0xf8] sm:$0xff]
    %381 = vset.pattern.permute.xlu0 0
    %382 = vperm.xlu0 %381, %v348
    %v383 = vpop.permute.xlu0 %382
    %386 = vset.pattern.permute.xlu0 0
    %387 = vperm.xlu0 %386, %v349
    %v388 = vpop.permute.xlu0 %387
    %391 = vset.pattern.permute.xlu0 0
    %392 = vperm.xlu0 %391, %v350
    %v393 = vpop.permute.xlu0 %392
    %396 = vset.pattern.permute.xlu0 0
    %397 = vperm.xlu0 %396, %v351
    %v398 = vpop.permute.xlu0 %397
    %401 = vset.pattern.permute.xlu0 0
    %402 = vperm.xlu0 %401, %v352
    %v403 = vpop.permute.xlu0 %402
    %406 = vset.pattern.permute.xlu0 0
    %407 = vperm.xlu0 %406, %v353
    %v408 = vpop.permute.xlu0 %407
    %411 = vset.pattern.permute.xlu0 0
    %412 = vperm.xlu0 %411, %v354
    %v413 = vpop.permute.xlu0 %412
    %416 = vset.pattern.permute.xlu0 0
    %417 = vperm.xlu0 %416, %v355
    %v418 = vpop.permute.xlu0 %417
    %421 = vset.pattern.permute.xlu0 0
    %422 = vperm.xlu0 %421, %v356
    %v423 = vpop.permute.xlu0 %422
    %426 = vset.pattern.permute.xlu0 0
    %427 = vperm.xlu0 %426, %v357
    %v428 = vpop.permute.xlu0 %427
    %431 = vset.pattern.permute.xlu0 0
    %432 = vperm.xlu0 %431, %v358
    %v433 = vpop.permute.xlu0 %432
    %436 = vset.pattern.permute.xlu0 0
    %437 = vperm.xlu0 %436, %v359
    %v438 = vpop.permute.xlu0 %437
    %441 = vset.pattern.permute.xlu0 0
    %442 = vperm.xlu0 %441, %v360
    %v443 = vpop.permute.xlu0 %442
    %446 = vset.pattern.permute.xlu0 0
    %447 = vperm.xlu0 %446, %v361
    %v448 = vpop.permute.xlu0 %447
    %451 = vset.pattern.permute.xlu0 0
    %452 = vperm.xlu0 %451, %v362
    %v453 = vpop.permute.xlu0 %452
    %456 = vset.pattern.permute.xlu0 0
    %457 = vperm.xlu0 %456, %v363
    %v458 = vpop.permute.xlu0 %457
    %461 = vset.pattern.permute.xlu0 0
    %462 = vperm.xlu0 %461, %v364
    %v463 = vpop.permute.xlu0 %462
    %466 = vset.pattern.permute.xlu0 0
    %467 = vperm.xlu0 %466, %v365
    %v468 = vpop.permute.xlu0 %467
    %471 = vset.pattern.permute.xlu0 0
    %472 = vperm.xlu0 %471, %v366
    %v473 = vpop.permute.xlu0 %472
    %476 = vset.pattern.permute.xlu0 0
    %477 = vperm.xlu0 %476, %v367
    %v478 = vpop.permute.xlu0 %477
    %481 = vset.pattern.permute.xlu0 0
    %482 = vperm.xlu0 %481, %v368
    %v483 = vpop.permute.xlu0 %482
    %486 = vset.pattern.permute.xlu0 0
    %487 = vperm.xlu0 %486, %v369
    %v488 = vpop.permute.xlu0 %487
    %491 = vset.pattern.permute.xlu0 0
    %492 = vperm.xlu0 %491, %v370
    %v493 = vpop.permute.xlu0 %492
    %496 = vset.pattern.permute.xlu0 0
    %497 = vperm.xlu0 %496, %v371
    %v498 = vpop.permute.xlu0 %497
    %501 = vset.pattern.permute.xlu0 0
    %502 = vperm.xlu0 %501, %v372
    %v503 = vpop.permute.xlu0 %502
    %506 = vset.pattern.permute.xlu0 0
    %507 = vperm.xlu0 %506, %v373
    %v508 = vpop.permute.xlu0 %507
    %511 = vset.pattern.permute.xlu0 0
    %512 = vperm.xlu0 %511, %v374
    %v513 = vpop.permute.xlu0 %512
    %516 = vset.pattern.permute.xlu0 0
    %517 = vperm.xlu0 %516, %v375
    %v518 = vpop.permute.xlu0 %517
    %521 = vset.pattern.permute.xlu0 0
    %522 = vperm.xlu0 %521, %v376
    %v523 = vpop.permute.xlu0 %522
    %526 = vset.pattern.permute.xlu0 0
    %527 = vperm.xlu0 %526, %v377
    %v528 = vpop.permute.xlu0 %527
    %531 = vset.pattern.permute.xlu0 0
    %532 = vperm.xlu0 %531, %v378
    %v533 = vpop.permute.xlu0 %532
    %536 = vset.pattern.permute.xlu0 0
    %537 = vperm.xlu0 %536, %v379
    %v538 = vpop.permute.xlu0 %537
    %v540 = vlaneseq
    %v541 = vshrl.u32 %v540, 7
    %v542 = vsub.s32 0, %v541
    %v543 = vrot.slane %v23, %v542
    %v544 = vsub.f32 %v383, %v543
    %v545 = vsub.f32 %v388, %v543
    %v546 = vsub.f32 %v393, %v543
    %v547 = vsub.f32 %v398, %v543
    %v548 = vsub.f32 %v403, %v543
    %v549 = vsub.f32 %v408, %v543
    %v550 = vsub.f32 %v413, %v543
    %v551 = vsub.f32 %v418, %v543
    %v552 = vsub.f32 %v423, %v543
    %v553 = vsub.f32 %v428, %v543
    %v554 = vsub.f32 %v433, %v543
    %v555 = vsub.f32 %v438, %v543
    %v556 = vsub.f32 %v443, %v543
    %v557 = vsub.f32 %v448, %v543
    %v558 = vsub.f32 %v453, %v543
    %v559 = vsub.f32 %v458, %v543
    %v560 = vsub.f32 %v463, %v543
    %v561 = vsub.f32 %v468, %v543
    %v562 = vsub.f32 %v473, %v543
    %v563 = vsub.f32 %v478, %v543
    %v564 = vsub.f32 %v483, %v543
    %v565 = vsub.f32 %v488, %v543
    %v566 = vsub.f32 %v493, %v543
    %v567 = vsub.f32 %v498, %v543
    %v568 = vsub.f32 %v503, %v543
    %v569 = vsub.f32 %v508, %v543
    %v570 = vsub.f32 %v513, %v543
    %v571 = vsub.f32 %v518, %v543
    %v572 = vsub.f32 %v523, %v543
    %v573 = vsub.f32 %v528, %v543
    %v574 = vsub.f32 %v533, %v543
    %v575 = vsub.f32 %v538, %v543
    %v576 = vand.u32 2147483647, %v544
    %v577 = vand.u32 2147483647, %v545
    %v578 = vand.u32 2147483647, %v546
    %v579 = vand.u32 2147483647, %v547
    %v580 = vand.u32 2147483647, %v548
    %v581 = vand.u32 2147483647, %v549
    %v582 = vand.u32 2147483647, %v550
    %v583 = vand.u32 2147483647, %v551
    %v584 = vand.u32 2147483647, %v552
    %v585 = vand.u32 2147483647, %v553
    %v586 = vand.u32 2147483647, %v554
    %v587 = vand.u32 2147483647, %v555
    %v588 = vand.u32 2147483647, %v556
    %v589 = vand.u32 2147483647, %v557
    %v590 = vand.u32 2147483647, %v558
    %v591 = vand.u32 2147483647, %v559
    %v592 = vand.u32 2147483647, %v560
    %v593 = vand.u32 2147483647, %v561
    %v594 = vand.u32 2147483647, %v562
    %v595 = vand.u32 2147483647, %v563
    %v596 = vand.u32 2147483647, %v564
    %v597 = vand.u32 2147483647, %v565
    %v598 = vand.u32 2147483647, %v566
    %v599 = vand.u32 2147483647, %v567
    %v600 = vand.u32 2147483647, %v568
    %v601 = vand.u32 2147483647, %v569
    %v602 = vand.u32 2147483647, %v570
    %v603 = vand.u32 2147483647, %v571
    %v604 = vand.u32 2147483647, %v572
    %v605 = vand.u32 2147483647, %v573
    %v606 = vand.u32 2147483647, %v574
    %v607 = vand.u32 2147483647, %v575
    %v608 = vsub.f32 1.0, %v576
    %v609 = vsub.f32 1.0, %v577
    %v610 = vsub.f32 1.0, %v578
    %v611 = vsub.f32 1.0, %v579
    %v612 = vsub.f32 1.0, %v580
    %v613 = vsub.f32 1.0, %v581
    %v614 = vsub.f32 1.0, %v582
    %v615 = vsub.f32 1.0, %v583
    %v616 = vsub.f32 1.0, %v584
    %v617 = vsub.f32 1.0, %v585
    %v618 = vsub.f32 1.0, %v586
    %v619 = vsub.f32 1.0, %v587
    %v620 = vsub.f32 1.0, %v588
    %v621 = vsub.f32 1.0, %v589
    %v622 = vsub.f32 1.0, %v590
    %v623 = vsub.f32 1.0, %v591
    %v624 = vsub.f32 1.0, %v592
    %v625 = vsub.f32 1.0, %v593
    %v626 = vsub.f32 1.0, %v594
    %v627 = vsub.f32 1.0, %v595
    %v628 = vsub.f32 1.0, %v596
    %v629 = vsub.f32 1.0, %v597
    %v630 = vsub.f32 1.0, %v598
    %v631 = vsub.f32 1.0, %v599
    %v632 = vsub.f32 1.0, %v600
    %v633 = vsub.f32 1.0, %v601
    %v634 = vsub.f32 1.0, %v602
    %v635 = vsub.f32 1.0, %v603
    %v636 = vsub.f32 1.0, %v604
    %v637 = vsub.f32 1.0, %v605
    %v638 = vsub.f32 1.0, %v606
    %v639 = vsub.f32 1.0, %v607
    %v640 = vmax.f32 %v608, 0.0
    %v641 = vmax.f32 %v609, 0.0
    %v642 = vmax.f32 %v610, 0.0
    %v643 = vmax.f32 %v611, 0.0
    %v644 = vmax.f32 %v612, 0.0
    %v645 = vmax.f32 %v613, 0.0
    %v646 = vmax.f32 %v614, 0.0
    %v647 = vmax.f32 %v615, 0.0
    %v648 = vmax.f32 %v616, 0.0
    %v649 = vmax.f32 %v617, 0.0
    %v650 = vmax.f32 %v618, 0.0
    %v651 = vmax.f32 %v619, 0.0
    %v652 = vmax.f32 %v620, 0.0
    %v653 = vmax.f32 %v621, 0.0
    %v654 = vmax.f32 %v622, 0.0
    %v655 = vmax.f32 %v623, 0.0
    %v656 = vmax.f32 %v624, 0.0
    %v657 = vmax.f32 %v625, 0.0
    %v658 = vmax.f32 %v626, 0.0
    %v659 = vmax.f32 %v627, 0.0
    %v660 = vmax.f32 %v628, 0.0
    %v661 = vmax.f32 %v629, 0.0
    %v662 = vmax.f32 %v630, 0.0
    %v663 = vmax.f32 %v631, 0.0
    %v664 = vmax.f32 %v632, 0.0
    %v665 = vmax.f32 %v633, 0.0
    %v666 = vmax.f32 %v634, 0.0
    %v667 = vmax.f32 %v635, 0.0
    %v668 = vmax.f32 %v636, 0.0
    %v669 = vmax.f32 %v637, 0.0
    %v670 = vmax.f32 %v638, 0.0
    %v671 = vmax.f32 %v639, 0.0
    %v672 = vmul.f32 %v316, %v640
    %v673 = vmul.f32 %v317, %v641
    %v674 = vmul.f32 %v318, %v642
    %v675 = vmul.f32 %v319, %v643
    %v676 = vmul.f32 %v320, %v644
    %v677 = vmul.f32 %v321, %v645
    %v678 = vmul.f32 %v322, %v646
    %v679 = vmul.f32 %v323, %v647
    %v680 = vmul.f32 %v324, %v648
    %v681 = vmul.f32 %v325, %v649
    %v682 = vmul.f32 %v326, %v650
    %v683 = vmul.f32 %v327, %v651
    %v684 = vmul.f32 %v328, %v652
    %v685 = vmul.f32 %v329, %v653
    %v686 = vmul.f32 %v330, %v654
    %v687 = vmul.f32 %v331, %v655
    %v688 = vmul.f32 %v332, %v656
    %v689 = vmul.f32 %v333, %v657
    %v690 = vmul.f32 %v334, %v658
    %v691 = vmul.f32 %v335, %v659
    %v692 = vmul.f32 %v336, %v660
    %v693 = vmul.f32 %v337, %v661
    %v694 = vmul.f32 %v338, %v662
    %v695 = vmul.f32 %v339, %v663
    %v696 = vmul.f32 %v340, %v664
    %v697 = vmul.f32 %v341, %v665
    %v698 = vmul.f32 %v342, %v666
    %v699 = vmul.f32 %v343, %v667
    %v700 = vmul.f32 %v344, %v668
    %v701 = vmul.f32 %v345, %v669
    %v702 = vmul.f32 %v346, %v670
    %v703 = vmul.f32 %v347, %v671
    %v704 = vld [vmem:[%s0] sm:$0xff]
    %v706 = vcombine.high %v704, %v704
    %708 = vmatprep.subr.mxu0 0.0
    %709 = vmatpush1.msra.mxu0 %v672
    %710 = vmatprep.subr.mxu0 0.0
    %711 = vmatpush1.msra.mxu0 %v673
    %712 = vmatprep.subr.mxu0 0.0
    %713 = vmatpush1.msra.mxu0 %v674
    %714 = vmatprep.subr.mxu0 0.0
    %715 = vmatpush1.msra.mxu0 %v675
    %716 = vmatprep.subr.mxu0 0.0
    %717 = vmatpush1.msra.mxu0 %v676
    %718 = vmatprep.subr.mxu0 0.0
    %719 = vmatpush1.msra.mxu0 %v677
    %720 = vmatprep.subr.mxu0 0.0
    %721 = vmatpush1.msra.mxu0 %v678
    %722 = vmatprep.subr.mxu0 0.0
    %723 = vmatpush1.msra.mxu0 %v679
    %724 = vmatprep.subr.mxu0 0.0
    %725 = vmatpush1.msra.mxu0 %v680
    %726 = vmatprep.subr.mxu0 0.0
    %727 = vmatpush1.msra.mxu0 %v681
    %728 = vmatprep.subr.mxu0 0.0
    %729 = vmatpush1.msra.mxu0 %v682
    %730 = vmatprep.subr.mxu0 0.0
    %731 = vmatpush1.msra.mxu0 %v683
    %732 = vmatprep.subr.mxu0 0.0
    %733 = vmatpush1.msra.mxu0 %v684
    %734 = vmatprep.subr.mxu0 0.0
    %735 = vmatpush1.msra.mxu0 %v685
    %736 = vmatprep.subr.mxu0 0.0
    %737 = vmatpush1.msra.mxu0 %v686
    %738 = vmatprep.subr.mxu0 0.0
    %739 = vmatpush1.msra.mxu0 %v687
    %740 = vmatprep.subr.mxu0 0.0
    %741 = vmatpush1.msra.mxu0 %v688
    %742 = vmatprep.subr.mxu0 0.0
    %743 = vmatpush1.msra.mxu0 %v689
    %744 = vmatprep.subr.mxu0 0.0
    %745 = vmatpush1.msra.mxu0 %v690
    %746 = vmatprep.subr.mxu0 0.0
    %747 = vmatpush1.msra.mxu0 %v691
    %748 = vmatprep.subr.mxu0 0.0
    %749 = vmatpush1.msra.mxu0 %v692
    %750 = vmatprep.subr.mxu0 0.0
    %751 = vmatpush1.msra.mxu0 %v693
    %752 = vmatprep.subr.mxu0 0.0
    %753 = vmatpush1.msra.mxu0 %v694
    %754 = vmatprep.subr.mxu0 0.0
    %755 = vmatpush1.msra.mxu0 %v695
    %756 = vmatprep.subr.mxu0 0.0
    %757 = vmatpush1.msra.mxu0 %v696
    %758 = vmatprep.subr.mxu0 0.0
    %759 = vmatpush1.msra.mxu0 %v697
    %760 = vmatprep.subr.mxu0 0.0
    %761 = vmatpush1.msra.mxu0 %v698
    %762 = vmatprep.subr.mxu0 0.0
    %763 = vmatpush1.msra.mxu0 %v699
    %764 = vmatprep.subr.mxu0 0.0
    %765 = vmatpush1.msra.mxu0 %v700
    %766 = vmatprep.subr.mxu0 0.0
    %767 = vmatpush1.msra.mxu0 %v701
    %768 = vmatprep.subr.mxu0 0.0
    %769 = vmatpush1.msra.mxu0 %v702
    %770 = vmatprep.subr.mxu0 0.0
    %771 = vmatpush1.msra.mxu0 %v703
    %772 = vmatprep.mubr.f32.mxu0 %v706
    %773 = vmatmul.mubr.f32.gmra.mrb[0].mxu0 %v704
    %v774 = vpop.f32.mrb[0].mxu0
    %v775 = vadd.f32 0.0, %v774
    %v776 = vpop.f32.mrb[0].mxu0
    %777 = vdwg.mxu0
    %778 = vst [vmem:[#allocation2] sm:$0xf] %v775
    // Predicated region
    $region18: #{tpu_custom_call.1} parent=1 // pred_check
      _
    $region19: #{tpu_custom_call.1} parent=1 // pred_check_branch
      %780 = sbr.rel (0) target = $region21
    $region20: #{tpu_custom_call.1} parent=1 // pred_region
      %s782 = ssub.s32 64, 64
      %783 = vsyncadd [#allocation3], %s782
      %s785 = sshll.u32 [#allocation2], 4
      %s786 = int_to_ptr.vmem [resolvable:$true] %s785
      %788 = dma.vmem_to_hbm [thread:$0]  %s786, 64, %s4, [#allocation3]
    $region21: #{tpu_custom_call.1} parent=1 // pred_fallthru
      _
    // Predicated region
    $region22: #{tpu_custom_call.1} parent=1 // pred_check
      _
    $region23: #{tpu_custom_call.1} parent=1 // pred_check_branch
      %790 = sbr.rel (0) target = $region25
    $region24: #{tpu_custom_call.1} parent=1 // pred_region
      %791 = dma.done [#allocation3], 64
    $region25: #{tpu_custom_call.1} parent=1 // pred_fallthru
      _
    %792 = vsyncpa [#allocation3], 1

</llo_original>
